<compile_context>
chip_gen: v7x
topology: tpu7x:2x2x1
jax: 0.10.0
libtpu: 0.0.40
codegen_flags: <defaults>
</compile_context>

<pallas_src>
import numpy as np
import jax
import jax.numpy as jnp
from jax import lax
from jax.experimental import pallas as pl
from jax.experimental.pallas import tpu as pltpu

N_KERNELS = 256          # module default n_kernels
MUL_FACTOR = 2.0         # module default mul_factor
_F32_TINY = np.float32(np.finfo(np.float32).tiny)   # smallest normal float32

_SMALL_N_MAX = 64        # single-block lane-dense path for N <= this
_TILE_M = 128            # output tile rows (large-N path)
_TILE_N = 128            # output tile cols (large-N path)
_CHUNK_TILED = 8         # multipliers folded into one exp in the tiled path
_CHUNK_SMALL = 2         # multipliers folded into one exp in the small path


def _squared_distances(xr, xc, row0, col0):
    """Squared pairwise distances between a row block and a col block of X.

    Gram formulation ||xi||^2 + ||xj||^2 - 2<xi,xj> on the MXU; clamps tiny
    negative values from cancellation and forces exact zeros on the global
    diagonal (torch.cdist(X, X) self-distances are exactly 0)."""
    g = lax.dot_general(xr, xc, (((1,), (1,)), ((), ())),
                        preferred_element_type=jnp.float32)          # (TM, TN)
    sr = jnp.sum(xr * xr, axis=-1, keepdims=True)                    # (TM, 1)
    sc = jnp.sum(xc * xc, axis=-1, keepdims=True)                    # (TN, 1)
    l2 = sr + sc.T - 2.0 * g
    ri = lax.broadcasted_iota(jnp.int32, l2.shape, 0) + row0
    ci = lax.broadcasted_iota(jnp.int32, l2.shape, 1) + col0
    return jnp.where(ri == ci, jnp.float32(0.0), jnp.maximum(l2, 0.0))


def _rbf_small_kernel(x_ref, neg_inv_ref, out_ref):
    # x_ref: (N, D) VMEM; neg_inv_ref: (1, K/2) VMEM; out_ref: (N, N) VMEM.
    x = x_ref[...]
    l2 = _squared_distances(x, x, 0, 0)                              # (N, N)
    neg_inv = neg_inv_ref[...]                                       # (1, K/2) = (1, 128)
    # Lane-dense layout: the 128 chunk-base scales live on the lane axis, so every
    # vreg of the exp is fully packed even for tiny N.
    t = jnp.exp(l2[:, :, None] * neg_inv[None, :, :])                # (N, N, 128)
    # mul_factor == 2: the other multiplier of each pair is the square of its base
    # (t -> multipliers[1::2], t*t -> multipliers[0::2]); squaring is VPU, not EUP.
    s = t + t * t
    out_ref[...] = jnp.sum(s, axis=-1)


def _rbf_tiled_kernel(neg_inv_ref, xr_ref, xc_ref, out_ref):
    # neg_inv_ref: (K/8,) SMEM; xr_ref: (TM, D); xc_ref: (TN, D); out_ref: (TM, TN).
    tm = xr_ref.shape[0]
    tn = xc_ref.shape[0]
    l2 = _squared_distances(xr_ref[...], xc_ref[...],
                            pl.program_id(0) * tm, pl.program_id(1) * tn)

    def chunk_body(c, acc):
        # One exp per chunk of 8 consecutive multipliers (chunk base = largest
        # multiplier of the chunk); mul_factor == 2 makes the remaining 7 terms
        # repeated squarings of the base: term_{k-1} = term_k ** 2.
        t = jnp.exp(l2 * neg_inv_ref[c])
        acc = acc + t
        for _ in range(_CHUNK_TILED - 1):
            t = t * t
            acc = acc + t
        return acc

    out_ref[...] = lax.fori_loop(0, neg_inv_ref.shape[0], chunk_body,
                                 jnp.zeros_like(l2), unroll=4)


def _neg_inv_scales(bw, multipliers, chunk):
    """-1 / (bw * base_multiplier) for the largest multiplier of each chunk."""
    base = multipliers[chunk - 1::chunk]
    # Clamp the scale to the smallest normal f32 BEFORE inverting so the inverse is
    # finite and the (exactly zero) diagonal yields exp(0) = 1 instead of 0 * inf.
    return -1.0 / jnp.maximum(bw * base, _F32_TINY)


def rbf_forward(x, multipliers):
    """x: (N, D) f32; multipliers: (K,) f32 -> (N, N) f32 RBF kernel-sum matrix."""
    n, d = x.shape
    k = multipliers.shape[0]

    # Center X (distances are translation invariant; improves Gram conditioning) and
    # compute the bandwidth analytically:  sum_ij ||xi-xj||^2 = 2*N*sum_i ||xi-mean||^2.
    xc = (x - jnp.mean(x, axis=0, keepdims=True)).astype(jnp.float32)
    l2_sum = 2.0 * n * jnp.sum(xc * xc)
    bw = l2_sum / jnp.float32(n * n - n)

    if n <= _SMALL_N_MAX:
        assert k % _CHUNK_SMALL == 0
        neg_inv = _neg_inv_scales(bw, multipliers, _CHUNK_SMALL).reshape(1, -1)
        return pl.pallas_call(
            _rbf_small_kernel,
            out_shape=jax.ShapeDtypeStruct((n, n), jnp.float32),
            in_specs=[
                pl.BlockSpec(memory_space=pltpu.MemorySpace.VMEM),   # X (whole array)
                pl.BlockSpec(memory_space=pltpu.MemorySpace.VMEM),   # neg-inverse scales
            ],
            out_specs=pl.BlockSpec(memory_space=pltpu.MemorySpace.VMEM),
        )(xc, neg_inv)

    # Large-N path: pad rows to a multiple of the tile size, run a parallel (i, j) grid.
    assert k % _CHUNK_TILED == 0
    neg_inv = _neg_inv_scales(bw, multipliers, _CHUNK_TILED)         # (K/8,) = (32,)
    n_pad = _TILE_M * pl.cdiv(n, _TILE_M)
    xp = jnp.pad(xc, ((0, n_pad - n), (0, 0)))
    grid = (n_pad // _TILE_M, n_pad // _TILE_N)
    out = pl.pallas_call(
        _rbf_tiled_kernel,
        out_shape=jax.ShapeDtypeStruct((n_pad, n_pad), jnp.float32),
        grid=grid,
        in_specs=[
            pl.BlockSpec((k // _CHUNK_TILED,), lambda i, j: (0,),
                         memory_space=pltpu.MemorySpace.SMEM),       # neg-inverse scales
            pl.BlockSpec((_TILE_M, d), lambda i, j: (i, 0)),         # X row block
            pl.BlockSpec((_TILE_N, d), lambda i, j: (j, 0)),         # X col block
        ],
        out_specs=pl.BlockSpec((_TILE_M, _TILE_N), lambda i, j: (i, j)),
        compiler_params=pltpu.CompilerParams(
            dimension_semantics=("parallel", "parallel"),
            vmem_limit_bytes=32 * 1024 * 1024,
        ),
    )(neg_inv, xp, xp)
    return out[:n, :n]


if __name__ == "__main__":
    key = jax.random.PRNGKey(0)

    # Deterministic module "parameters" from __init__:
    #   bandwidth_multipliers = mul_factor ** (arange(n_kernels) - n_kernels // 2)
    mult64 = MUL_FACTOR ** (np.arange(N_KERNELS, dtype=np.float64) - N_KERNELS // 2)
    multipliers = jnp.asarray(mult64.astype(np.float32))

    def reference(x_in):
        # float64 numpy reference implementing the torch forward verbatim.
        x64 = np.asarray(x_in, dtype=np.float64)
        diff = x64[:, None, :] - x64[None, :, :]
        l2 = np.sum(diff * diff, axis=-1)                            # cdist(X, X) ** 2
        n = x64.shape[0]
        bw = l2.sum() / (n * n - n)
        out = np.zeros((n, n))
        for k0 in range(0, N_KERNELS, 32):                           # chunked for memory
            out += np.exp(-l2[None] / (bw * mult64[k0:k0 + 32])[:, None, None]).sum(0)
        return out

    k1, k2 = jax.random.split(key)

    # Small-N lane-dense path (matches the module's typical tiny-batch use).
    x_small = jax.random.normal(k1, (8, 32), dtype=jnp.float32)
    out_small = jax.block_until_ready(rbf_forward(x_small, multipliers))
    np.testing.assert_allclose(np.asarray(out_small), reference(x_small),
                               rtol=2e-4, atol=1e-3)

    # Tiled large-N path (exercises the parallel (i, j) grid + edge padding).
    x_large = jax.random.normal(k2, (200, 32), dtype=jnp.float32)
    out_large = jax.block_until_ready(rbf_forward(x_large, multipliers))
    np.testing.assert_allclose(np.asarray(out_large), reference(x_large),
                               rtol=2e-4, atol=1e-3)

    print("KERNEL_OK")
</pallas_src>

<mosaic_0001>
module attributes {stable_mosaic.version = 11 : i64} {
  func.func @_rbf_small_kernel(%arg0: memref<8x32xf32, #tpu.memory_space<vmem>>, %arg1: memref<1x128xf32, #tpu.memory_space<vmem>>, %arg2: memref<8x8xf32, #tpu.memory_space<vmem>>) attributes {dimension_semantics = [], scalar_prefetch = 0 : i64, scratch_operands = 0 : i64, tpu.core_type = #tpu.core_type<tc>} {
    %c0 = arith.constant 0 : index
    %c0_0 = arith.constant 0 : index
    %0 = vector.load %arg0[%c0, %c0_0] : memref<8x32xf32, #tpu.memory_space<vmem>>, vector<8x32xf32>
    %cst = arith.constant dense<0.000000e+00> : vector<8x8xf32>
    %1 = tpu.matmul %0, %0, %cst {dimension_numbers = #tpu.dot_dimension_numbers<[1], [1], [0], [0], [0, 0, 1, 0], [], []>} : vector<8x32xf32>, vector<8x32xf32>, vector<8x8xf32> -> vector<8x8xf32>
    %2 = arith.mulf %0, %0 : vector<8x32xf32>
    %cst_1 = arith.constant dense<0.000000e+00> : vector<8xf32>
    %3 = vector.multi_reduction <add>, %2, %cst_1 [1] : vector<8x32xf32> to vector<8xf32>
    %4 = vector.shape_cast %3 : vector<8xf32> to vector<8x1xf32>
    %5 = arith.mulf %0, %0 : vector<8x32xf32>
    %cst_2 = arith.constant dense<0.000000e+00> : vector<8xf32>
    %6 = vector.multi_reduction <add>, %5, %cst_2 [1] : vector<8x32xf32> to vector<8xf32>
    %7 = vector.shape_cast %6 : vector<8xf32> to vector<8x1xf32>
    %8 = tpu.transpose %7, [1, 0] : vector<8x1xf32> -> vector<1x8xf32>
    %9 = vector.broadcast %4 : vector<8x1xf32> to vector<8x8xf32>
    %10 = vector.broadcast %8 : vector<1x8xf32> to vector<8x8xf32>
    %11 = arith.addf %9, %10 : vector<8x8xf32>
    %cst_3 = arith.constant 2.000000e+00 : f32
    %12 = vector.broadcast %cst_3 : f32 to vector<8x8xf32>
    %13 = arith.mulf %12, %1 : vector<8x8xf32>
    %14 = arith.subf %11, %13 : vector<8x8xf32>
    %15 = tpu.iota {dimensions = array<i32: 0>} : vector<8x8xi32>
    %c0_i32 = arith.constant 0 : i32
    %16 = vector.broadcast %c0_i32 : i32 to vector<8x8xi32>
    %17 = arith.addi %15, %16 : vector<8x8xi32>
    %18 = tpu.iota {dimensions = array<i32: 1>} : vector<8x8xi32>
    %c0_i32_4 = arith.constant 0 : i32
    %19 = vector.broadcast %c0_i32_4 : i32 to vector<8x8xi32>
    %20 = arith.addi %18, %19 : vector<8x8xi32>
    %21 = arith.cmpi eq, %17, %20 : vector<8x8xi32>
    %cst_5 = arith.constant 0.000000e+00 : f32
    %22 = vector.broadcast %cst_5 : f32 to vector<8x8xf32>
    %23 = arith.maximumf %14, %22 : vector<8x8xf32>
    %cst_6 = arith.constant 0.000000e+00 : f32
    %24 = vector.broadcast %cst_6 : f32 to vector<8x8xf32>
    %25 = arith.select %21, %24, %23 : vector<8x8xi1>, vector<8x8xf32>
    %c0_7 = arith.constant 0 : index
    %c0_8 = arith.constant 0 : index
    %26 = vector.load %arg1[%c0_7, %c0_8] : memref<1x128xf32, #tpu.memory_space<vmem>>, vector<1x128xf32>
    %27 = vector.shape_cast %25 : vector<8x8xf32> to vector<8x8x1xf32>
    %28 = vector.shape_cast %26 : vector<1x128xf32> to vector<1x1x128xf32>
    %29 = vector.broadcast %27 : vector<8x8x1xf32> to vector<8x8x128xf32>
    %30 = vector.broadcast %28 : vector<1x1x128xf32> to vector<8x8x128xf32>
    %31 = arith.mulf %29, %30 : vector<8x8x128xf32>
    %32 = math.exp %31 : vector<8x8x128xf32>
    %33 = arith.mulf %32, %32 : vector<8x8x128xf32>
    %34 = arith.addf %32, %33 : vector<8x8x128xf32>
    %cst_9 = arith.constant dense<0.000000e+00> : vector<8x8xf32>
    %35 = vector.multi_reduction <add>, %34, %cst_9 [2] : vector<8x8x128xf32> to vector<8x8xf32>
    %c0_10 = arith.constant 0 : index
    %c0_11 = arith.constant 0 : index
    %36 = vector.load %arg2[%c0_10, %c0_11] : memref<8x8xf32, #tpu.memory_space<vmem>>, vector<8x8xf32>
    tpu.vector_store %arg2[%c0_10, %c0_11], %35 {strides = array<i32>} : memref<8x8xf32, #tpu.memory_space<vmem>>, vector<8x8xf32>,
    return
  }
}

</mosaic_0001>

<llo_original>
// kernel: tpu_custom_call.1
$region0: #{tpu_custom_call.1}
  #allocation0 [shape = 'u32[]', space=smem, size = 0x4, offset = 0x4, fixed_abs, tag = 'smem constant byte address 0x4 - core index']
  #allocation1 [shape = 'u32[144,128]{1,0:T(1,128)}', space=vmem, size = 0x12000, scoped, tag = 'internal scratch']
  %s0 = inlined_call_operand.hbm [shape: f32[8,32], index: 0, kind: input, shape index: {}]
  %s1 = inlined_call_operand.vmem [shape: f32[1,128], index: 1, kind: input, shape index: {}]
  %s2 = inlined_call_operand.hbm [shape: f32[8,8], index: 2, kind: output, shape index: {}]
  %s3 = sld [smem:[#allocation0]]
  $region22: #{tpu_custom_call.1} parent=0
    _
  %s5 = ssub.s32 1, %s3
  %s6 = scalar_select 0, %s5, %s3
  $region1: #{tpu_custom_call.1} parent=0
    #allocation2 [shape = 'u8[4096]{0}', space=vmem, size = 0x1000, scoped, tag = 'input window, operand 0, single buffered']
    #allocation3 [shape = 's32[1]{0}', space=sflag, size = 0x4, scoped, tag = 'scoped memory for tpu_custom_call.1']
    #allocation4 [shape = 's32[1]{0}', space=sflag, size = 0x4, scoped, tag = 'scoped memory for tpu_custom_call.1']
    #allocation5 [shape = 'u8[4096]{0}', space=vmem, size = 0x1000, scoped, tag = 'output window, operand 0, single buffered']
    %7 = vsyncpa [#allocation3], 0
    %8 = vsyncpa [#allocation4], 0
    // Predicated region
    $region2: #{tpu_custom_call.1} parent=1 // pred_check
      _
    $region3: #{tpu_custom_call.1} parent=1 // pred_check_branch
      %10 = sbr.rel (0) target = $region5
    $region4: #{tpu_custom_call.1} parent=1 // pred_region
      %s12 = ssub.s32 128, 128
      %13 = vsyncadd [#allocation3], %s12
      %s15 = sshll.u32 [#allocation2], 4
      %s16 = int_to_ptr.vmem [resolvable:$true] %s15
      %18 = dma.hbm_to_vmem [thread:$0]  %s0, 128, %s16, [#allocation3]
    $region5: #{tpu_custom_call.1} parent=1 // pred_fallthru
      _
    // Predicated region
    $region6: #{tpu_custom_call.1} parent=1 // pred_check
      _
    $region7: #{tpu_custom_call.1} parent=1 // pred_check_branch
      %20 = sbr.rel (0) target = $region9
    $region8: #{tpu_custom_call.1} parent=1 // pred_region
      _
    $region9: #{tpu_custom_call.1} parent=1 // pred_fallthru
      _
    // Predicated region
    $region10: #{tpu_custom_call.1} parent=1 // pred_check
      _
    $region11: #{tpu_custom_call.1} parent=1 // pred_check_branch
      %22 = sbr.rel (0) target = $region13
    $region12: #{tpu_custom_call.1} parent=1 // pred_region
      %23 = dma.done [#allocation3], 128
    $region13: #{tpu_custom_call.1} parent=1 // pred_fallthru
      _
    %v24 = vld [vmem:[#allocation2] sm:$0xff]
    %vm25 = vcmask 261120
    %v27 = vsel %vm25, %v24, 0
    %29 = vmatprep.subr.mxu0 0.0
    %30 = vmatpush1.xpose.msra.mxu0 %v27
    %31 = vmatprep.subr.mxu0 0.0
    %32 = vmatpush1.xpose.msra.mxu0 0.0
    %33 = vmatprep.subr.mxu0 0.0
    %34 = vmatpush1.xpose.msra.mxu0 0.0
    %35 = vmatprep.subr.mxu0 0.0
    %36 = vmatpush1.xpose.msra.mxu0 0.0
    %37 = vmatprep.subr.mxu0 0.0
    %38 = vmatpush1.xpose.msra.mxu0 0.0
    %39 = vmatprep.subr.mxu0 0.0
    %40 = vmatpush1.xpose.msra.mxu0 0.0
    %41 = vmatprep.subr.mxu0 0.0
    %42 = vmatpush1.xpose.msra.mxu0 0.0
    %43 = vmatprep.subr.mxu0 0.0
    %44 = vmatpush1.xpose.msra.mxu0 0.0
    %45 = vmatprep.subr.mxu0 0.0
    %46 = vmatpush1.xpose.msra.mxu0 0.0
    %47 = vmatprep.subr.mxu0 0.0
    %48 = vmatpush1.xpose.msra.mxu0 0.0
    %49 = vmatprep.subr.mxu0 0.0
    %50 = vmatpush1.xpose.msra.mxu0 0.0
    %51 = vmatprep.subr.mxu0 0.0
    %52 = vmatpush1.xpose.msra.mxu0 0.0
    %53 = vmatprep.subr.mxu0 0.0
    %54 = vmatpush1.xpose.msra.mxu0 0.0
    %55 = vmatprep.subr.mxu0 0.0
    %56 = vmatpush1.xpose.msra.mxu0 0.0
    %57 = vmatprep.subr.mxu0 0.0
    %58 = vmatpush1.xpose.msra.mxu0 0.0
    %59 = vmatprep.subr.mxu0 0.0
    %60 = vmatpush1.xpose.msra.mxu0 0.0
    %61 = vmatprep.subr.mxu0 0.0
    %62 = vmatpush1.xpose.msra.mxu0 0.0
    %63 = vmatprep.subr.mxu0 0.0
    %64 = vmatpush1.xpose.msra.mxu0 0.0
    %65 = vmatprep.subr.mxu0 0.0
    %66 = vmatpush1.xpose.msra.mxu0 0.0
    %67 = vmatprep.subr.mxu0 0.0
    %68 = vmatpush1.xpose.msra.mxu0 0.0
    %69 = vmatprep.subr.mxu0 0.0
    %70 = vmatpush1.xpose.msra.mxu0 0.0
    %71 = vmatprep.subr.mxu0 0.0
    %72 = vmatpush1.xpose.msra.mxu0 0.0
    %73 = vmatprep.subr.mxu0 0.0
    %74 = vmatpush1.xpose.msra.mxu0 0.0
    %75 = vmatprep.subr.mxu0 0.0
    %76 = vmatpush1.xpose.msra.mxu0 0.0
    %77 = vmatprep.subr.mxu0 0.0
    %78 = vmatpush1.xpose.msra.mxu0 0.0
    %79 = vmatprep.subr.mxu0 0.0
    %80 = vmatpush1.xpose.msra.mxu0 0.0
    %81 = vmatprep.subr.mxu0 0.0
    %82 = vmatpush1.xpose.msra.mxu0 0.0
    %83 = vmatprep.subr.mxu0 0.0
    %84 = vmatpush1.xpose.msra.mxu0 0.0
    %85 = vmatprep.subr.mxu0 0.0
    %86 = vmatpush1.xpose.msra.mxu0 0.0
    %87 = vmatprep.subr.mxu0 0.0
    %88 = vmatpush1.xpose.msra.mxu0 0.0
    %89 = vmatprep.subr.mxu0 0.0
    %90 = vmatpush1.xpose.msra.mxu0 0.0
    %91 = vmatprep.subr.mxu0 0.0
    %92 = vmatpush1.xpose.msra.mxu0 0.0
    %93 = vmatprep.mubr.f32.mxu0 0.0
    %94 = vmatmul.mubr.f32.gmra.mrb[0].mxu0 %v27
    %v95 = vpop.f32.mrb[0].mxu0
    %v96 = vadd.f32 0.0, %v95
    %v97 = vpop.f32.mrb[0].mxu0
    %98 = vdwg.mxu0
    %v99 = vmul.f32 %v24, %v24
    %v100 = vsel %vm25, %v99, 0.0
    %101 = vadd.xlane.f32.xlu0 %v100
    %v102 = vpop.xlane.xlu0 %101
    %103 = vxpose.xlu0.b32.start [1/16] %v102, 128
    %104 = vxpose.xlu0.b32.cont [2/16] 0.0, 128
    %105 = vxpose.xlu0.b32.cont [3/16] 0.0, 128
    %106 = vxpose.xlu0.b32.cont [4/16] 0.0, 128
    %107 = vxpose.xlu0.b32.cont [5/16] 0.0, 128
    %108 = vxpose.xlu0.b32.cont [6/16] 0.0, 128
    %109 = vxpose.xlu0.b32.cont [7/16] 0.0, 128
    %110 = vxpose.xlu0.b32.cont [8/16] 0.0, 128
    %111 = vxpose.xlu0.b32.cont [9/16] 0.0, 128
    %112 = vxpose.xlu0.b32.cont [10/16] 0.0, 128
    %113 = vxpose.xlu0.b32.cont [11/16] 0.0, 128
    %114 = vxpose.xlu0.b32.cont [12/16] 0.0, 128
    %115 = vxpose.xlu0.b32.cont [13/16] 0.0, 128
    %116 = vxpose.xlu0.b32.cont [14/16] 0.0, 128
    %117 = vxpose.xlu0.b32.cont [15/16] 0.0, 128
    %118 = vxpose.xlu0.b32.end [16/16] 0.0, 128
    %v119 = vpop.trf.xlu0
    %v120 = vpop.trf.xlu0
    %v121 = vpop.trf.xlu0
    %v122 = vpop.trf.xlu0
    %v123 = vpop.trf.xlu0
    %v124 = vpop.trf.xlu0
    %v125 = vpop.trf.xlu0
    %v126 = vpop.trf.xlu0
    %v127 = vpop.trf.xlu0
    %v128 = vpop.trf.xlu0
    %v129 = vpop.trf.xlu0
    %v130 = vpop.trf.xlu0
    %v131 = vpop.trf.xlu0
    %v132 = vpop.trf.xlu0
    %v133 = vpop.trf.xlu0
    %v134 = vpop.trf.xlu0
    %v135 = vlaneseq
    %v136 = vshrl.u32 %v135, 7
    %v137 = vsub.s32 0, %v136
    %v138 = vrot.slane %v119, %v137
    %v139 = vadd.f32 %v102, %v138
    %v140 = vmul.f32 %v96, 2.0
    %v141 = vsub.f32 %v139, %v140
    %v142 = vlaneseq
    %v143 = vshrl.u32 %v142, 7
    %v144 = vlaneseq
    %v145 = vand.u32 %v144, 127
    %vm146 = vcmp.eq.s32.totalorder %v143, %v145
    %v147 = vmax.f32 %v141, 0.0
    %v148 = vsel %vm146, 0.0, %v147
    %v149 = vld [vmem:[%s1] sm:$0x1]
    %v150 = vlaneseq
    %v151 = vshrl.u32 %v150, 7
    %v152 = vsub.s32 0, %v151
    %v153 = vrot.slane %v148, %v152
    %155 = vbcast.lane.b32.xlu0 %v153, 256
    %v156 = vpop.permute.xlu0 %155
    %v157 = vlaneseq
    %v158 = vshrl.u32 %v157, 7
    %v159 = vsub.s32 1, %v158
    %v160 = vrot.slane %v148, %v159
    %162 = vbcast.lane.b32.xlu0 %v160, 256
    %v163 = vpop.permute.xlu0 %162
    %v164 = vlaneseq
    %v165 = vshrl.u32 %v164, 7
    %v166 = vsub.s32 2, %v165
    %v167 = vrot.slane %v148, %v166
    %169 = vbcast.lane.b32.xlu0 %v167, 256
    %v170 = vpop.permute.xlu0 %169
    %v171 = vlaneseq
    %v172 = vshrl.u32 %v171, 7
    %v173 = vsub.s32 3, %v172
    %v174 = vrot.slane %v148, %v173
    %176 = vbcast.lane.b32.xlu0 %v174, 256
    %v177 = vpop.permute.xlu0 %176
    %v178 = vlaneseq
    %v179 = vshrl.u32 %v178, 7
    %v180 = vsub.s32 4, %v179
    %v181 = vrot.slane %v148, %v180
    %183 = vbcast.lane.b32.xlu0 %v181, 256
    %v184 = vpop.permute.xlu0 %183
    %v185 = vlaneseq
    %v186 = vshrl.u32 %v185, 7
    %v187 = vsub.s32 5, %v186
    %v188 = vrot.slane %v148, %v187
    %190 = vbcast.lane.b32.xlu0 %v188, 256
    %v191 = vpop.permute.xlu0 %190
    %v192 = vlaneseq
    %v193 = vshrl.u32 %v192, 7
    %v194 = vsub.s32 6, %v193
    %v195 = vrot.slane %v148, %v194
    %197 = vbcast.lane.b32.xlu0 %v195, 256
    %v198 = vpop.permute.xlu0 %197
    %v199 = vlaneseq
    %v200 = vshrl.u32 %v199, 7
    %v201 = vsub.s32 7, %v200
    %v202 = vrot.slane %v148, %v201
    %204 = vbcast.lane.b32.xlu0 %v202, 256
    %v205 = vpop.permute.xlu0 %204
    %v207 = vlaneseq
    %v208 = vshrl.u32 %v207, 7
    %v209 = vsub.s32 0, %v208
    %v210 = vrot.slane %v149, %v209
    %v212 = vmul.f32 %v156, %v210
    %v213 = vmul.f32 %v163, %v210
    %v214 = vmul.f32 %v170, %v210
    %v215 = vmul.f32 %v177, %v210
    %v216 = vmul.f32 %v184, %v210
    %v217 = vmul.f32 %v191, %v210
    %v218 = vmul.f32 %v198, %v210
    %v219 = vmul.f32 %v205, %v210
    %v220 = vmul.f32 %v212, 1.442695
    %v221 = vpow.pop %v220
    %v222 = vmul.f32 %v213, 1.442695
    %v223 = vpow.pop %v222
    %v224 = vmul.f32 %v214, 1.442695
    %v225 = vpow.pop %v224
    %v226 = vmul.f32 %v215, 1.442695
    %v227 = vpow.pop %v226
    %v228 = vmul.f32 %v216, 1.442695
    %v229 = vpow.pop %v228
    %v230 = vmul.f32 %v217, 1.442695
    %v231 = vpow.pop %v230
    %v232 = vmul.f32 %v218, 1.442695
    %v233 = vpow.pop %v232
    %v234 = vmul.f32 %v219, 1.442695
    %v235 = vpow.pop %v234
    %v236 = vmul.f32 %v221, %v221
    %v237 = vmul.f32 %v223, %v223
    %v238 = vmul.f32 %v225, %v225
    %v239 = vmul.f32 %v227, %v227
    %v240 = vmul.f32 %v229, %v229
    %v241 = vmul.f32 %v231, %v231
    %v242 = vmul.f32 %v233, %v233
    %v243 = vmul.f32 %v235, %v235
    %v244 = vadd.f32 %v221, %v236
    %v245 = vadd.f32 %v223, %v237
    %v246 = vadd.f32 %v225, %v238
    %v247 = vadd.f32 %v227, %v239
    %v248 = vadd.f32 %v229, %v240
    %v249 = vadd.f32 %v231, %v241
    %v250 = vadd.f32 %v233, %v242
    %v251 = vadd.f32 %v235, %v243
    %252 = vadd.xlane.f32.xlu0 %v244
    %v253 = vpop.xlane.xlu0 %252
    %254 = vadd.xlane.f32.xlu0 %v245
    %v255 = vpop.xlane.xlu0 %254
    %256 = vadd.xlane.f32.xlu0 %v246
    %v257 = vpop.xlane.xlu0 %256
    %258 = vadd.xlane.f32.xlu0 %v247
    %v259 = vpop.xlane.xlu0 %258
    %260 = vadd.xlane.f32.xlu0 %v248
    %v261 = vpop.xlane.xlu0 %260
    %262 = vadd.xlane.f32.xlu0 %v249
    %v263 = vpop.xlane.xlu0 %262
    %264 = vadd.xlane.f32.xlu0 %v250
    %v265 = vpop.xlane.xlu0 %264
    %266 = vadd.xlane.f32.xlu0 %v251
    %v267 = vpop.xlane.xlu0 %266
    %v276 = vlaneseq
    %v277 = vshrl.u32 %v276, 7
    %v278 = vsub.s32 %v145, %v277
    %v279 = vrot.slane %v253, %v278
    %v280 = vlaneseq
    %v281 = vshrl.u32 %v280, 7
    %v282 = vsub.s32 %v145, %v281
    %v283 = vrot.slane %v255, %v282
    %v284 = vlaneseq
    %v285 = vshrl.u32 %v284, 7
    %v286 = vsub.s32 %v145, %v285
    %v287 = vrot.slane %v257, %v286
    %v288 = vlaneseq
    %v289 = vshrl.u32 %v288, 7
    %v290 = vsub.s32 %v145, %v289
    %v291 = vrot.slane %v259, %v290
    %v292 = vlaneseq
    %v293 = vshrl.u32 %v292, 7
    %v294 = vsub.s32 %v145, %v293
    %v295 = vrot.slane %v261, %v294
    %v296 = vlaneseq
    %v297 = vshrl.u32 %v296, 7
    %v298 = vsub.s32 %v145, %v297
    %v299 = vrot.slane %v263, %v298
    %v300 = vlaneseq
    %v301 = vshrl.u32 %v300, 7
    %v302 = vsub.s32 %v145, %v301
    %v303 = vrot.slane %v265, %v302
    %v304 = vlaneseq
    %v305 = vshrl.u32 %v304, 7
    %v306 = vsub.s32 %v145, %v305
    %v307 = vrot.slane %v267, %v306
    %vm308 = vcmask 1041409
    %v309 = vsel %vm308, %v283, %v279
    %vm310 = vcmask 1042434
    %v311 = vsel %vm310, %v287, %v309
    %vm312 = vcmask 1043459
    %v313 = vsel %vm312, %v291, %v311
    %vm314 = vcmask 1044484
    %v315 = vsel %vm314, %v295, %v313
    %vm316 = vcmask 1045509
    %v317 = vsel %vm316, %v299, %v315
    %vm318 = vcmask 1046534
    %v319 = vsel %vm318, %v303, %v317
    %vm320 = vcmask 1047559
    %v321 = vsel %vm320, %v307, %v319
    %vm323 = vcmask 64512
    %324 = vst.msk [vmem:[#allocation5] sm:$0xff] %vm323, %v321
    // Predicated region
    $region14: #{tpu_custom_call.1} parent=1 // pred_check
      _
    $region15: #{tpu_custom_call.1} parent=1 // pred_check_branch
      %326 = sbr.rel (0) target = $region17
    $region16: #{tpu_custom_call.1} parent=1 // pred_region
      %s328 = ssub.s32 128, 128
      %329 = vsyncadd [#allocation4], %s328
      %s331 = sshll.u32 [#allocation5], 4
      %s332 = int_to_ptr.vmem [resolvable:$true] %s331
      %334 = dma.vmem_to_hbm [thread:$0]  %s332, 128, %s2, [#allocation4]
    $region17: #{tpu_custom_call.1} parent=1 // pred_fallthru
      _
    // Predicated region
    $region18: #{tpu_custom_call.1} parent=1 // pred_check
      _
    $region19: #{tpu_custom_call.1} parent=1 // pred_check_branch
      %336 = sbr.rel (0) target = $region21
    $region20: #{tpu_custom_call.1} parent=1 // pred_region
      %337 = dma.done [#allocation4], 128
    $region21: #{tpu_custom_call.1} parent=1 // pred_fallthru
      _
    %338 = vsyncpa [#allocation3], 1
    %339 = vsyncpa [#allocation4], 1

</llo_original>
